<compile_context>
chip_gen: v7x
topology: tpu7x:2x2x1
jax: 0.10.0
libtpu: 0.0.40
codegen_flags: <defaults>
</compile_context>

<pallas_src>
import functools

import jax
import jax.numpy as jnp
from jax import lax
from jax.experimental import pallas as pl
from jax.experimental.pallas import tpu as pltpu


def _round_up(x, m):
    return (x + m - 1) // m * m


# ----------------------------------------------------------------------------
# Generic tiled matmul + bias kernel:  (M, K) @ (K, N) + (1, N) -> (M, N)
# Used for the hoisted LSTM input projection and for the decoder.
# ----------------------------------------------------------------------------
def _matmul_bias_kernel(x_ref, w_ref, b_ref, o_ref):
    acc = jnp.dot(x_ref[...].astype(w_ref.dtype), w_ref[...],
                  preferred_element_type=jnp.float32)
    o_ref[...] = acc + b_ref[...]


def matmul_bias(x, w, b2d, *, tm=256, tn=512):
    """x: (M, K) f32; w: (K, N) bf16/f32; b2d: (1, N) f32. Returns (M, N) f32."""
    M, K = x.shape
    N = w.shape[1]
    tm = min(tm, M)      # tiles are 256/512 (MXU-shaped) clamped to full dims
    tn = min(tn, N)
    grid = (pl.cdiv(M, tm), pl.cdiv(N, tn))
    return pl.pallas_call(
        _matmul_bias_kernel,
        out_shape=jax.ShapeDtypeStruct((M, N), jnp.float32),
        grid_spec=pltpu.PrefetchScalarGridSpec(
            num_scalar_prefetch=0,
            grid=grid,
            in_specs=[
                pl.BlockSpec((tm, K), lambda i, j: (i, 0)),
                pl.BlockSpec((K, tn), lambda i, j: (0, j)),
                pl.BlockSpec((1, tn), lambda i, j: (0, j)),
            ],
            out_specs=pl.BlockSpec((tm, tn), lambda i, j: (i, j)),
        ),
        compiler_params=pltpu.CompilerParams(
            dimension_semantics=("parallel", "parallel")),
    )(x, w, b2d)


# ----------------------------------------------------------------------------
# LSTM recurrence kernel.
#   xp   : (T, Bp, 4*Hp) precomputed x @ W_ih^T + (b_ih + b_hh), gate-padded
#   whh  : (Hp, 4*Hp)    gate-padded W_hh^T (bf16), left in HBM, copied once
#   grid : (T // Tb,)    sequential over time blocks; h/c persist in VMEM
# ----------------------------------------------------------------------------
def _lstm_recurrent_kernel(xp_ref, h0_ref, c0_ref, whh_ref,
                           y_ref, hT_ref, cT_ref,
                           w_scr, h_scr, c_scr, dma_sem, *, Hp, Tb):
    tblk = pl.program_id(0)

    @pl.when(tblk == 0)
    def _():
        # Single-buffered resident weight: one DMA into persistent VMEM scratch.
        cp = pltpu.make_async_copy(whh_ref, w_scr, dma_sem)
        cp.start()
        # Overlap the state init with the weight DMA.
        h_scr[...] = h0_ref[...]
        c_scr[...] = c0_ref[...]
        cp.wait()

    def step(i, carry):
        h, c = carry
        # Only the recurrent GEMM is on the serial path (input proj hoisted).
        gates = xp_ref[i] + jnp.dot(h.astype(w_scr.dtype), w_scr[...],
                                    preferred_element_type=jnp.float32)
        # Lane-aligned gate slices (Hp is a multiple of 128); f32 nonlinearities.
        i_g = jax.nn.sigmoid(gates[:, 0 * Hp:1 * Hp])
        f_g = jax.nn.sigmoid(gates[:, 1 * Hp:2 * Hp])
        g_g = jnp.tanh(gates[:, 2 * Hp:3 * Hp])
        o_g = jax.nn.sigmoid(gates[:, 3 * Hp:4 * Hp])
        c_new = f_g * c + i_g * g_g
        h_new = o_g * jnp.tanh(c_new)
        y_ref[i] = h_new
        return h_new, c_new

    h, c = lax.fori_loop(0, Tb, step, (h_scr[...], c_scr[...]), unroll=True)
    h_scr[...] = h
    c_scr[...] = c

    @pl.when(tblk == pl.num_programs(0) - 1)
    def _():
        hT_ref[...] = h
        cT_ref[...] = c


def lstm_layer(xp, h0p, c0p, whh_p, *, Tb):
    """xp: (T, Bp, 4*Hp) f32; h0p/c0p: (Bp, Hp) f32; whh_p: (Hp, 4*Hp) bf16."""
    T, Bp, G = xp.shape
    Hp = G // 4
    n_blocks = T // Tb
    kernel = functools.partial(_lstm_recurrent_kernel, Hp=Hp, Tb=Tb)
    # NOTE: at production sizes, set pltpu.CompilerParams(vmem_limit_bytes=...)
    # per TPU generation (v7x has 64 MiB VMEM) to budget the resident W_hh.
    y, hT, cT = pl.pallas_call(
        kernel,
        out_shape=(
            jax.ShapeDtypeStruct((T, Bp, Hp), jnp.float32),
            jax.ShapeDtypeStruct((Bp, Hp), jnp.float32),
            jax.ShapeDtypeStruct((Bp, Hp), jnp.float32),
        ),
        grid_spec=pltpu.PrefetchScalarGridSpec(
            num_scalar_prefetch=0,
            grid=(n_blocks,),
            in_specs=[
                pl.BlockSpec((Tb, Bp, G), lambda t: (t, 0, 0)),
                pl.BlockSpec((Bp, Hp), lambda t: (0, 0)),
                pl.BlockSpec((Bp, Hp), lambda t: (0, 0)),
                pl.BlockSpec(memory_space=pl.ANY),   # W_hh^T stays in HBM
            ],
            out_specs=[
                pl.BlockSpec((Tb, Bp, Hp), lambda t: (t, 0, 0)),
                pl.BlockSpec((Bp, Hp), lambda t: (0, 0)),
                pl.BlockSpec((Bp, Hp), lambda t: (0, 0)),
            ],
            scratch_shapes=[
                pltpu.VMEM((Hp, G), jnp.bfloat16),   # resident W_hh^T (1 copy)
                pltpu.VMEM((Bp, Hp), jnp.float32),   # h state
                pltpu.VMEM((Bp, Hp), jnp.float32),   # c state
                pltpu.SemaphoreType.DMA(()),
            ],
        ),
        compiler_params=pltpu.CompilerParams(
            dimension_semantics=("arbitrary",)),
    )(xp, h0p, c0p, whh_p)
    return y, hT, cT


# ----------------------------------------------------------------------------
# Weight packing into the gate-padded layout (host/XLA glue, done once).
# ----------------------------------------------------------------------------
def _pack_gate_cols(wT, H, Hp):
    """wT: (I, 4H) gate-major columns -> (I, 4*Hp), gate g in cols [g*Hp, g*Hp+H)."""
    I = wT.shape[0]
    w3 = wT.reshape(I, 4, H)
    out = jnp.zeros((I, 4, Hp), wT.dtype).at[:, :, :H].set(w3)
    return out.reshape(I, 4 * Hp)


def _pad_rows(w, rows):
    r, c = w.shape
    return jnp.zeros((rows, c), w.dtype).at[:r, :].set(w)


def _pack_gate_bias(b, H, Hp):
    b3 = b.reshape(4, H)
    out = jnp.zeros((4, Hp), b.dtype).at[:, :H].set(b3)
    return out.reshape(1, 4 * Hp)


# ----------------------------------------------------------------------------
# Full RNNModel forward (rnn_type='LSTM')
# ----------------------------------------------------------------------------
def init_params(key, ntoken, ninp, nhid, nlayers):
    initrange = 0.1
    ks = jax.random.split(key, 2 + 4 * nlayers)
    params = {
        "encoder": jax.random.uniform(ks[0], (ntoken, ninp), jnp.float32,
                                      -initrange, initrange),
        "decoder_w": jax.random.uniform(ks[1], (ntoken, nhid), jnp.float32,
                                        -initrange, initrange),
        "decoder_b": jnp.zeros((ntoken,), jnp.float32),
        "lstm": [],
    }
    stdv = 1.0 / jnp.sqrt(jnp.float32(nhid))
    for l in range(nlayers):
        in_sz = ninp if l == 0 else nhid
        kw = ks[2 + 4 * l: 2 + 4 * (l + 1)]
        params["lstm"].append({
            "w_ih": jax.random.uniform(kw[0], (4 * nhid, in_sz), jnp.float32,
                                       -stdv, stdv),
            "w_hh": jax.random.uniform(kw[1], (4 * nhid, nhid), jnp.float32,
                                       -stdv, stdv),
            "b_ih": jax.random.uniform(kw[2], (4 * nhid,), jnp.float32,
                                       -stdv, stdv),
            "b_hh": jax.random.uniform(kw[3], (4 * nhid,), jnp.float32,
                                       -stdv, stdv),
        })
    return params


def _choose_tb(T, Bp, Hp):
    """Largest divisor of T (<=32) whose double-buffered (xp, y) block fits ~8 MiB."""
    bytes_per_step = Bp * (4 * Hp + Hp) * 4          # xp row-block + y row-block, f32
    max_tb = max(1, (8 << 20) // (2 * bytes_per_step))
    return next(d for d in (32, 16, 8, 4, 2, 1) if T % d == 0 and d <= max_tb)


def rnn_model_forward(params, tokens, hidden):
    """tokens: (T, B) int32; hidden: (h0, c0) each (nlayers, B, nhid)."""
    h0_all, c0_all = hidden
    T, B = tokens.shape
    ntoken, _ = params["encoder"].shape
    H = h0_all.shape[-1]
    Hp = _round_up(H, 128)                       # lane-aligned hidden width
    Bp = _round_up(B, 8)                         # sublane-aligned batch
    Np = _round_up(ntoken, 128)                  # lane-dense decoder output

    # Embedding lookup (glue) + dropout (identity, eval mode).
    emb = jnp.take(params["encoder"], tokens, axis=0)      # (T, B, ninp)
    emb = jnp.pad(emb, ((0, 0), (0, Bp - B), (0, 0)))      # (T, Bp, ninp)

    Tb = _choose_tb(T, Bp, Hp)

    x2d = emb.reshape(T * Bp, emb.shape[-1])     # (T*Bp, ninp)
    h_finals, c_finals = [], []
    for l, lp in enumerate(params["lstm"]):
        wih_t = jnp.transpose(lp["w_ih"])                     # (I, 4H)
        wih_p = _pack_gate_cols(wih_t, H, Hp)                 # (I, 4Hp)
        if l > 0:                                             # input is padded to Hp
            wih_p = _pad_rows(wih_p, Hp)
        whh_p = _pad_rows(_pack_gate_cols(jnp.transpose(lp["w_hh"]), H, Hp), Hp)
        bias_p = _pack_gate_bias(lp["b_ih"] + lp["b_hh"], H, Hp)   # (1, 4Hp)

        # Hoisted input projection: one MXU-shaped matmul over all T*Bp rows.
        xp2d = matmul_bias(x2d, wih_p.astype(jnp.bfloat16), bias_p)
        xp = xp2d.reshape(T, Bp, 4 * Hp)

        h0p = jnp.pad(h0_all[l], ((0, Bp - B), (0, Hp - H)))
        c0p = jnp.pad(c0_all[l], ((0, Bp - B), (0, Hp - H)))

        y, hTp, cTp = lstm_layer(xp, h0p, c0p,
                                 whh_p.astype(jnp.bfloat16), Tb=Tb)
        h_finals.append(hTp[:B, :H])
        c_finals.append(cTp[:B, :H])
        x2d = y.reshape(T * Bp, Hp)              # keep padded (zeros) for next layer
        # inter-layer dropout: identity (eval mode)

    # Decoder: pad W^T rows to Hp (padded activations are exactly zero) and
    # columns to Np so the big output slab is lane-dense; slice the pad off.
    wdec_p = jnp.zeros((Hp, Np), jnp.float32).at[:H, :ntoken].set(
        jnp.transpose(params["decoder_w"]))
    bdec_p = jnp.zeros((1, Np), jnp.float32).at[0, :ntoken].set(params["decoder_b"])
    decoded2d = matmul_bias(x2d, wdec_p.astype(jnp.bfloat16), bdec_p)
    decoded = decoded2d.reshape(T, Bp, Np)[:, :B, :ntoken]
    hidden_out = (jnp.stack(h_finals, axis=0), jnp.stack(c_finals, axis=0))
    return decoded, hidden_out


if __name__ == "__main__":
    ntoken, ninp, nhid, nlayers = 50, 32, 32, 2
    T, B = 8, 2

    key = jax.random.PRNGKey(0)
    pkey, tkey = jax.random.split(key)
    params = init_params(pkey, ntoken, ninp, nhid, nlayers)

    tokens = jax.random.randint(tkey, (T, B), 0, ntoken, dtype=jnp.int32)
    h0 = jnp.zeros((nlayers, B, nhid), jnp.float32)
    c0 = jnp.zeros((nlayers, B, nhid), jnp.float32)

    decoded, (hT, cT) = rnn_model_forward(params, tokens, (h0, c0))
    jax.block_until_ready((decoded, hT, cT))

    assert decoded.shape == (T, B, ntoken)
    assert hT.shape == (nlayers, B, nhid) and cT.shape == (nlayers, B, nhid)
    assert bool(jnp.all(jnp.isfinite(decoded)))
    print("KERNEL_OK")
</pallas_src>

<mosaic_0001>
module attributes {stable_mosaic.version = 11 : i64} {
  func.func @_matmul_bias_kernel(%arg0: i32, %arg1: i32, %arg2: memref<64x32xf32, #tpu.memory_space<vmem>>, %arg3: memref<32x512xbf16, #tpu.memory_space<vmem>>, %arg4: memref<1x512xf32, #tpu.memory_space<vmem>>, %arg5: memref<64x512xf32, #tpu.memory_space<vmem>>) attributes {dimension_semantics = [#tpu.dimension_semantics<parallel>, #tpu.dimension_semantics<parallel>], iteration_bounds = array<i64: 1, 1>, scalar_prefetch = 0 : i64, scratch_operands = 0 : i64, tpu.core_type = #tpu.core_type<tc>, window_params = [{transform_indices = @transform_0, window_bounds = array<i64: 64, 32>}, {transform_indices = @transform_1, window_bounds = array<i64: 32, 512>}, {transform_indices = @transform_2, window_bounds = array<i64: 1, 512>}, {transform_indices = @transform_3, window_bounds = array<i64: 64, 512>}]} {
    %c0 = arith.constant 0 : index
    %c0_0 = arith.constant 0 : index
    %0 = vector.load %arg2[%c0, %c0_0] : memref<64x32xf32, #tpu.memory_space<vmem>>, vector<64x32xf32>
    %1 = arith.truncf %0 : vector<64x32xf32> to vector<64x32xbf16>
    %c0_1 = arith.constant 0 : index
    %c0_2 = arith.constant 0 : index
    %2 = vector.load %arg3[%c0_1, %c0_2] : memref<32x512xbf16, #tpu.memory_space<vmem>>, vector<32x512xbf16>
    %cst = arith.constant dense<0.000000e+00> : vector<64x512xf32>
    %3 = tpu.matmul %1, %2, %cst {dimension_numbers = #tpu.dot_dimension_numbers<[1], [0], [0], [1], [0, 0, 1, 1], [], []>} : vector<64x32xbf16>, vector<32x512xbf16>, vector<64x512xf32> -> vector<64x512xf32>
    %c0_3 = arith.constant 0 : index
    %c0_4 = arith.constant 0 : index
    %4 = vector.load %arg4[%c0_3, %c0_4] : memref<1x512xf32, #tpu.memory_space<vmem>>, vector<1x512xf32>
    %5 = vector.broadcast %4 : vector<1x512xf32> to vector<64x512xf32>
    %6 = arith.addf %3, %5 : vector<64x512xf32>
    %c0_5 = arith.constant 0 : index
    %c0_6 = arith.constant 0 : index
    %7 = vector.load %arg5[%c0_5, %c0_6] : memref<64x512xf32, #tpu.memory_space<vmem>>, vector<64x512xf32>
    tpu.vector_store %arg5[%c0_5, %c0_6], %6 {strides = array<i32>} : memref<64x512xf32, #tpu.memory_space<vmem>>, vector<64x512xf32>,
    return
  }
  func.func @transform_0(%arg0: i32, %arg1: i32) -> (i32, i32) {
    %c0_i32 = arith.constant 0 : i32
    %c0_i32_0 = arith.constant 0 : i32
    return %arg0, %c0_i32 : i32, i32
  }
  func.func @transform_1(%arg0: i32, %arg1: i32) -> (i32, i32) {
    %c0_i32 = arith.constant 0 : i32
    %c0_i32_0 = arith.constant 0 : i32
    return %c0_i32, %arg1 : i32, i32
  }
  func.func @transform_2(%arg0: i32, %arg1: i32) -> (i32, i32) {
    %c0_i32 = arith.constant 0 : i32
    %c0_i32_0 = arith.constant 0 : i32
    return %c0_i32, %arg1 : i32, i32
  }
  func.func @transform_3(%arg0: i32, %arg1: i32) -> (i32, i32) {
    %c0_i32 = arith.constant 0 : i32
    return %arg0, %arg1 : i32, i32
  }
}

</mosaic_0001>

<llo_original>
// kernel: tpu_custom_call.1
$region0: #{tpu_custom_call.1}
  #allocation0 [shape = 'u32[]', space=smem, size = 0x4, offset = 0x4, fixed_abs, tag = 'smem constant byte address 0x4 - core index']
  #allocation1 [shape = 'u32[144,128]{1,0:T(1,128)}', space=vmem, size = 0x12000, scoped, tag = 'internal scratch']
  %s0 = inlined_call_operand.vmem [shape: f32[64,32], index: 0, kind: input, shape index: {}]
  %s1 = inlined_call_operand.vmem [shape: bf16[32,512], index: 1, kind: input, shape index: {}]
  %s2 = inlined_call_operand.vmem [shape: f32[1,512], index: 2, kind: input, shape index: {}]
  %s3 = inlined_call_operand.hbm [shape: f32[64,512], index: 3, kind: output, shape index: {}]
  %s4 = sld [smem:[#allocation0]]
  $region22: #{tpu_custom_call.1} parent=0
    _
  %s6 = ssub.s32 1, %s4
  %s7 = scalar_select 0, %s6, %s4
  $region1: #{tpu_custom_call.1} parent=0
    #allocation2 [shape = 'u8[131072]{0}', space=vmem, size = 0x20000, scoped, tag = 'output window, operand 0, single buffered']
    #allocation3 [shape = 's32[1]{0}', space=sflag, size = 0x4, scoped, tag = 'scoped memory for tpu_custom_call.1']
    %8 = vsyncpa [#allocation3], 0
    // Predicated region
    $region2: #{tpu_custom_call.1} parent=1 // pred_check
      _
    $region3: #{tpu_custom_call.1} parent=1 // pred_check_branch
      %10 = sbr.rel (0) target = $region5
    $region4: #{tpu_custom_call.1} parent=1 // pred_region
      _
    $region5: #{tpu_custom_call.1} parent=1 // pred_fallthru
      _
    // Predicated region
    $region6: #{tpu_custom_call.1} parent=1 // pred_check
      _
    $region7: #{tpu_custom_call.1} parent=1 // pred_check_branch
      %12 = sbr.rel (0) target = $region9
    $region8: #{tpu_custom_call.1} parent=1 // pred_region
      _
    $region9: #{tpu_custom_call.1} parent=1 // pred_fallthru
      _
    // Predicated region
    $region10: #{tpu_custom_call.1} parent=1 // pred_check
      _
    $region11: #{tpu_custom_call.1} parent=1 // pred_check_branch
      %14 = sbr.rel (0) target = $region13
    $region12: #{tpu_custom_call.1} parent=1 // pred_region
      _
    $region13: #{tpu_custom_call.1} parent=1 // pred_fallthru
      _
    %v16 = vld [vmem:[%s0] sm:$0xff]
    %v17 = vld [vmem:[%s0 + $0x8] sm:$0xff]
    %v18 = vld [vmem:[%s0 + $0x10] sm:$0xff]
    %v19 = vld [vmem:[%s0 + $0x18] sm:$0xff]
    %v20 = vld [vmem:[%s0 + $0x20] sm:$0xff]
    %v21 = vld [vmem:[%s0 + $0x28] sm:$0xff]
    %v22 = vld [vmem:[%s0 + $0x30] sm:$0xff]
    %v23 = vld [vmem:[%s0 + $0x38] sm:$0xff]
    %v24 = vpack.c.bf16 %v17, %v16
    %v25 = vpack.c.bf16 %v19, %v18
    %v26 = vpack.c.bf16 %v21, %v20
    %v27 = vpack.c.bf16 %v23, %v22
    %v28 = vld [vmem:[%s1] sm:$0xff]
    %v29 = vld [vmem:[%s1 + $0x8] sm:$0xff]
    %v30 = vld [vmem:[%s1 + $0x10] sm:$0xff]
    %v31 = vld [vmem:[%s1 + $0x18] sm:$0xff]
    %v32 = vld [vmem:[%s1 + $0x20] sm:$0xff]
    %v33 = vld [vmem:[%s1 + $0x28] sm:$0xff]
    %v34 = vld [vmem:[%s1 + $0x30] sm:$0xff]
    %v35 = vld [vmem:[%s1 + $0x38] sm:$0xff]
    %v36 = vld [vmem:[%s2] sm:$0xf]
    %v38 = vlaneseq
    %v39 = vshrl.u32 %v38, 7
    %v40 = vsub.s32 0, %v39
    %v41 = vrot.slane %v36, %v40
    %v42 = vlaneseq
    %v43 = vshrl.u32 %v42, 7
    %v44 = vsub.s32 1, %v43
    %v45 = vrot.slane %v36, %v44
    %v46 = vlaneseq
    %v47 = vshrl.u32 %v46, 7
    %v48 = vsub.s32 2, %v47
    %v49 = vrot.slane %v36, %v48
    %v50 = vlaneseq
    %v51 = vshrl.u32 %v50, 7
    %v52 = vsub.s32 3, %v51
    %v53 = vrot.slane %v36, %v52
    %v66 = vunpack.c.l.b16 %v28
    %v67 = vunpack.c.h.b16 %v28
    %v68 = vunpack.c.l.b16 %v29
    %v69 = vunpack.c.h.b16 %v29
    %v70 = vunpack.c.l.b16 %v30
    %v71 = vunpack.c.h.b16 %v30
    %v72 = vunpack.c.l.b16 %v31
    %v73 = vunpack.c.h.b16 %v31
    %v74 = vunpack.c.l.b16 %v32
    %v75 = vunpack.c.h.b16 %v32
    %v76 = vunpack.c.l.b16 %v33
    %v77 = vunpack.c.h.b16 %v33
    %v78 = vunpack.c.l.b16 %v34
    %v79 = vunpack.c.h.b16 %v34
    %v80 = vunpack.c.l.b16 %v35
    %v81 = vunpack.c.h.b16 %v35
    %v82 = vpack.c.b16 %v70, %v66
    %v83 = vpack.c.b16 %v71, %v67
    %v84 = vpack.c.b16 %v72, %v68
    %v85 = vpack.c.b16 %v73, %v69
    %v86 = vpack.c.b16 %v78, %v74
    %v87 = vpack.c.b16 %v79, %v75
    %v88 = vpack.c.b16 %v80, %v76
    %v89 = vpack.c.b16 %v81, %v77
    %vm98 = vcmask 261120
    %v100 = vsel %vm98, %v24, 0
    %v103 = vsel %vm98, %v25, 0
    %v106 = vsel %vm98, %v26, 0
    %v109 = vsel %vm98, %v27, 0
    %111 = vmatprep.subr.bf16.mxu0 %v83
    %112 = vmatpush1.bf16.msra.mxu0 %v82
    %113 = vmatprep.subr.bf16.mxu0 %v87
    %114 = vmatpush1.bf16.msra.mxu0 %v86
    %115 = vmatprep.subr.bf16.mxu0 0
    %116 = vmatpush1.bf16.msra.mxu0 0
    %117 = vmatprep.subr.bf16.mxu0 0
    %118 = vmatpush1.bf16.msra.mxu0 0
    %119 = vmatprep.subr.bf16.mxu0 0
    %120 = vmatpush1.bf16.msra.mxu0 0
    %121 = vmatprep.subr.bf16.mxu0 0
    %122 = vmatpush1.bf16.msra.mxu0 0
    %123 = vmatprep.subr.bf16.mxu0 0
    %124 = vmatpush1.bf16.msra.mxu0 0
    %125 = vmatprep.subr.bf16.mxu0 0
    %126 = vmatpush1.bf16.msra.mxu0 0
    %127 = vmatprep.subr.bf16.mxu0 0
    %128 = vmatpush1.bf16.msra.mxu0 0
    %129 = vmatprep.subr.bf16.mxu0 0
    %130 = vmatpush1.bf16.msra.mxu0 0
    %131 = vmatprep.subr.bf16.mxu0 0
    %132 = vmatpush1.bf16.msra.mxu0 0
    %133 = vmatprep.subr.bf16.mxu0 0
    %134 = vmatpush1.bf16.msra.mxu0 0
    %135 = vmatprep.subr.bf16.mxu0 0
    %136 = vmatpush1.bf16.msra.mxu0 0
    %137 = vmatprep.subr.bf16.mxu0 0
    %138 = vmatpush1.bf16.msra.mxu0 0
    %139 = vmatprep.subr.bf16.mxu0 0
    %140 = vmatpush1.bf16.msra.mxu0 0
    %141 = vmatprep.subr.bf16.mxu0 0
    %142 = vmatpush1.bf16.msra.mxu0 0
    %143 = vmatprep.mubr.bf16.mxu0 0
    %144 = vmatmul.mubr.bf16.gmra.mrb[0].mxu0 %v100
    %v145 = vpop.f32.mrb[0].mxu0
    %v146 = vadd.f32 %v41, %v145
    %v147 = vpop.f32.mrb[0].mxu0
    %v148 = vadd.f32 %v45, %v147
    %v149 = vpop.f32.mrb[0].mxu0
    %v150 = vadd.f32 %v41, %v149
    %v151 = vpop.f32.mrb[0].mxu0
    %v152 = vadd.f32 %v45, %v151
    %153 = vmatprep.mubr.bf16.mxu0 0
    %154 = vmatmul.mubr.bf16.gmra.mrb[0].mxu0 %v103
    %v155 = vpop.f32.mrb[0].mxu0
    %v156 = vadd.f32 %v41, %v155
    %v157 = vpop.f32.mrb[0].mxu0
    %v158 = vadd.f32 %v45, %v157
    %v159 = vpop.f32.mrb[0].mxu0
    %v160 = vadd.f32 %v41, %v159
    %v161 = vpop.f32.mrb[0].mxu0
    %v162 = vadd.f32 %v45, %v161
    %163 = vmatprep.mubr.bf16.mxu0 0
    %164 = vmatmul.mubr.bf16.gmra.mrb[0].mxu0 %v106
    %v165 = vpop.f32.mrb[0].mxu0
    %v166 = vadd.f32 %v41, %v165
    %v167 = vpop.f32.mrb[0].mxu0
    %v168 = vadd.f32 %v45, %v167
    %v169 = vpop.f32.mrb[0].mxu0
    %v170 = vadd.f32 %v41, %v169
    %v171 = vpop.f32.mrb[0].mxu0
    %v172 = vadd.f32 %v45, %v171
    %173 = vmatprep.mubr.bf16.mxu0 0
    %174 = vmatmul.mubr.bf16.gmra.mrb[0].mxu0 %v109
    %v175 = vpop.f32.mrb[0].mxu0
    %v176 = vadd.f32 %v41, %v175
    %v177 = vpop.f32.mrb[0].mxu0
    %v178 = vadd.f32 %v45, %v177
    %v179 = vpop.f32.mrb[0].mxu0
    %v180 = vadd.f32 %v41, %v179
    %v181 = vpop.f32.mrb[0].mxu0
    %v182 = vadd.f32 %v45, %v181
    %183 = vdwg.mxu0
    %184 = vmatprep.subr.bf16.mxu0 %v85
    %185 = vmatpush1.bf16.msra.mxu0 %v84
    %186 = vmatprep.subr.bf16.mxu0 %v89
    %187 = vmatpush1.bf16.msra.mxu0 %v88
    %188 = vmatprep.subr.bf16.mxu0 0
    %189 = vmatpush1.bf16.msra.mxu0 0
    %190 = vmatprep.subr.bf16.mxu0 0
    %191 = vmatpush1.bf16.msra.mxu0 0
    %192 = vmatprep.subr.bf16.mxu0 0
    %193 = vmatpush1.bf16.msra.mxu0 0
    %194 = vmatprep.subr.bf16.mxu0 0
    %195 = vmatpush1.bf16.msra.mxu0 0
    %196 = vmatprep.subr.bf16.mxu0 0
    %197 = vmatpush1.bf16.msra.mxu0 0
    %198 = vmatprep.subr.bf16.mxu0 0
    %199 = vmatpush1.bf16.msra.mxu0 0
    %200 = vmatprep.subr.bf16.mxu0 0
    %201 = vmatpush1.bf16.msra.mxu0 0
    %202 = vmatprep.subr.bf16.mxu0 0
    %203 = vmatpush1.bf16.msra.mxu0 0
    %204 = vmatprep.subr.bf16.mxu0 0
    %205 = vmatpush1.bf16.msra.mxu0 0
    %206 = vmatprep.subr.bf16.mxu0 0
    %207 = vmatpush1.bf16.msra.mxu0 0
    %208 = vmatprep.subr.bf16.mxu0 0
    %209 = vmatpush1.bf16.msra.mxu0 0
    %210 = vmatprep.subr.bf16.mxu0 0
    %211 = vmatpush1.bf16.msra.mxu0 0
    %212 = vmatprep.subr.bf16.mxu0 0
    %213 = vmatpush1.bf16.msra.mxu0 0
    %214 = vmatprep.subr.bf16.mxu0 0
    %215 = vmatpush1.bf16.msra.mxu0 0
    %216 = vmatprep.mubr.bf16.mxu0 0
    %217 = vmatmul.mubr.bf16.gmra.mrb[0].mxu0 %v100
    %v218 = vpop.f32.mrb[0].mxu0
    %v219 = vadd.f32 %v49, %v218
    %v220 = vpop.f32.mrb[0].mxu0
    %v221 = vadd.f32 %v53, %v220
    %v222 = vpop.f32.mrb[0].mxu0
    %v223 = vadd.f32 %v49, %v222
    %v224 = vpop.f32.mrb[0].mxu0
    %v225 = vadd.f32 %v53, %v224
    %226 = vmatprep.mubr.bf16.mxu0 0
    %227 = vmatmul.mubr.bf16.gmra.mrb[0].mxu0 %v103
    %v228 = vpop.f32.mrb[0].mxu0
    %v229 = vadd.f32 %v49, %v228
    %v230 = vpop.f32.mrb[0].mxu0
    %v231 = vadd.f32 %v53, %v230
    %v232 = vpop.f32.mrb[0].mxu0
    %v233 = vadd.f32 %v49, %v232
    %v234 = vpop.f32.mrb[0].mxu0
    %v235 = vadd.f32 %v53, %v234
    %236 = vmatprep.mubr.bf16.mxu0 0
    %237 = vmatmul.mubr.bf16.gmra.mrb[0].mxu0 %v106
    %v238 = vpop.f32.mrb[0].mxu0
    %v239 = vadd.f32 %v49, %v238
    %v240 = vpop.f32.mrb[0].mxu0
    %v241 = vadd.f32 %v53, %v240
    %v242 = vpop.f32.mrb[0].mxu0
    %v243 = vadd.f32 %v49, %v242
    %v244 = vpop.f32.mrb[0].mxu0
    %v245 = vadd.f32 %v53, %v244
    %246 = vmatprep.mubr.bf16.mxu0 0
    %247 = vmatmul.mubr.bf16.gmra.mrb[0].mxu0 %v109
    %v248 = vpop.f32.mrb[0].mxu0
    %v249 = vadd.f32 %v49, %v248
    %v250 = vpop.f32.mrb[0].mxu0
    %v251 = vadd.f32 %v53, %v250
    %v252 = vpop.f32.mrb[0].mxu0
    %v253 = vadd.f32 %v49, %v252
    %v254 = vpop.f32.mrb[0].mxu0
    %v255 = vadd.f32 %v53, %v254
    %256 = vdwg.mxu0
    %257 = vst [vmem:[#allocation2] sm:$0xff] %v146
    %258 = vst [vmem:[#allocation2 + $0x8] sm:$0xff] %v148
    %259 = vst [vmem:[#allocation2 + $0x10] sm:$0xff] %v219
    %260 = vst [vmem:[#allocation2 + $0x18] sm:$0xff] %v221
    %261 = vst [vmem:[#allocation2 + $0x20] sm:$0xff] %v150
    %262 = vst [vmem:[#allocation2 + $0x28] sm:$0xff] %v152
    %263 = vst [vmem:[#allocation2 + $0x30] sm:$0xff] %v223
    %264 = vst [vmem:[#allocation2 + $0x38] sm:$0xff] %v225
    %265 = vst [vmem:[#allocation2 + $0x40] sm:$0xff] %v156
    %266 = vst [vmem:[#allocation2 + $0x48] sm:$0xff] %v158
    %267 = vst [vmem:[#allocation2 + $0x50] sm:$0xff] %v229
    %268 = vst [vmem:[#allocation2 + $0x58] sm:$0xff] %v231
    %269 = vst [vmem:[#allocation2 + $0x60] sm:$0xff] %v160
    %270 = vst [vmem:[#allocation2 + $0x68] sm:$0xff] %v162
    %271 = vst [vmem:[#allocation2 + $0x70] sm:$0xff] %v233
    %272 = vst [vmem:[#allocation2 + $0x78] sm:$0xff] %v235
    %273 = vst [vmem:[#allocation2 + $0x80] sm:$0xff] %v166
    %274 = vst [vmem:[#allocation2 + $0x88] sm:$0xff] %v168
    %275 = vst [vmem:[#allocation2 + $0x90] sm:$0xff] %v239
    %276 = vst [vmem:[#allocation2 + $0x98] sm:$0xff] %v241
    %277 = vst [vmem:[#allocation2 + $0xa0] sm:$0xff] %v170
    %278 = vst [vmem:[#allocation2 + $0xa8] sm:$0xff] %v172
    %279 = vst [vmem:[#allocation2 + $0xb0] sm:$0xff] %v243
    %280 = vst [vmem:[#allocation2 + $0xb8] sm:$0xff] %v245
    %281 = vst [vmem:[#allocation2 + $0xc0] sm:$0xff] %v176
    %282 = vst [vmem:[#allocation2 + $0xc8] sm:$0xff] %v178
    %283 = vst [vmem:[#allocation2 + $0xd0] sm:$0xff] %v249
    %284 = vst [vmem:[#allocation2 + $0xd8] sm:$0xff] %v251
    %285 = vst [vmem:[#allocation2 + $0xe0] sm:$0xff] %v180
    %286 = vst [vmem:[#allocation2 + $0xe8] sm:$0xff] %v182
    %287 = vst [vmem:[#allocation2 + $0xf0] sm:$0xff] %v253
    %288 = vst [vmem:[#allocation2 + $0xf8] sm:$0xff] %v255
    // Predicated region
    $region14: #{tpu_custom_call.1} parent=1 // pred_check
      _
    $region15: #{tpu_custom_call.1} parent=1 // pred_check_branch
      %290 = sbr.rel (0) target = $region17
    $region16: #{tpu_custom_call.1} parent=1 // pred_region
      %s292 = ssub.s32 4096, 4096
      %293 = vsyncadd [#allocation3], %s292
      %s294 = sshll.u32 [#allocation2], 4
      %s295 = int_to_ptr.vmem [resolvable:$true] %s294
      %300 = dma.vmem_to_hbm [thread:$0]  %s295, 4096, %s3, [#allocation3], 512, 512, 32
    $region17: #{tpu_custom_call.1} parent=1 // pred_fallthru
      _
    // Predicated region
    $region18: #{tpu_custom_call.1} parent=1 // pred_check
      _
    $region19: #{tpu_custom_call.1} parent=1 // pred_check_branch
      %302 = sbr.rel (0) target = $region21
    $region20: #{tpu_custom_call.1} parent=1 // pred_region
      %303 = dma.done [#allocation3], 4096
    $region21: #{tpu_custom_call.1} parent=1 // pred_fallthru
      _
    %304 = vsyncpa [#allocation3], 1

</llo_original>
